<compile_context>
chip_gen: v5e
topology: v5e:2x2
jax: 0.10.0
libtpu: 0.0.40
codegen_flags: <defaults>
</compile_context>

<pallas_src>
import numpy as np
import jax
import jax.numpy as jnp
from jax import lax
from jax.experimental import pallas as pl


def _attn_kernel(xm_ref, x2_ref, wqk_bd_ref, bqk_ref, wv_ref, bv_ref,
                 blockones_ref, expand_ref, o_ref):
    f32 = jnp.float32

    x1 = xm_ref[0]                   # (S_pad, H*D)  heads folded onto the 128-lane axis
    mask = xm_ref[1]                 # (S_pad, H*D)
    x2 = x2_ref[...]                 # (H*D, D)      rows = (head, k)
    wqk_bd = wqk_bd_ref[...]         # (H*D, H*D)    block-diagonal W_qk^T   (prepared once)
    bqk = bqk_ref[...]               # (1, H*D)      per-head-tiled bias     (prepared once)
    wv_t = wv_ref[...]               # (D, D)        W_v^T                   (prepared once)
    bv = bv_ref[...]                 # (1, D)
    blockones = blockones_ref[...]   # (H*D, H*D)    block-diagonal ones     (prepared once)
    expand = expand_ref[...]         # (D, H*D)      lane-tiling matrix      (prepared once)

    # qk Linear for all heads in one lane-dense MXU matmul.
    qk = jnp.dot(x1, wqk_bd, preferred_element_type=f32) + bqk            # (S_pad, H*D)

    # value Linear, heads batched along the row axis (independent of the qk chain).
    value = jnp.dot(x2, wv_t, preferred_element_type=f32) + bv            # (H*D, D)

    # Per-head sum-of-squares broadcast to every lane of that head, then L2-normalize.
    # |scaled| <= 1, so the usual softmax max-subtraction is unnecessary and skipped.
    sumsq = jnp.dot(qk * qk, blockones, preferred_element_type=f32)       # (S_pad, H*D)
    e = jnp.exp(qk * lax.rsqrt(sumsq))

    # Per-head softmax denominator, broadcast across each head's lanes.
    denom = jnp.dot(e, blockones, preferred_element_type=f32)

    # Expand per-head value (H*D, D) into a block-diagonal (H*D, H*D) so the final
    # head-batched qk@value is one lane-dense MXU matmul.  Off the softmax path.
    value_bd = jnp.dot(value, expand, preferred_element_type=f32) * blockones

    # TODO(synk): reference computes F.dropout(qk, p=0.5) into an unused temp (dead code); omitted.
    # The per-head 1/denom is constant within each head's lane block, so it commutes with the
    # block-diagonal matmul: apply it AFTER the matmul so the final MXU op does not wait on
    # the denom reduction / reciprocal (EUP work hides under the matmul instead).
    num = jnp.dot(e * mask, value_bd, preferred_element_type=f32)         # (S_pad, H*D)
    o_ref[...] = (num * pl.reciprocal(denom, approx=True)).astype(o_ref.dtype)


def prepare_params(params, num_blocks):
    """One-time (per weight-change) host-side prep.

    Keeps the kron block-diagonalization, transposes, bias tiling and the constant
    block-diagonal helper matrices OUT of the per-call path (perf feedback #1/#5).
    """
    wqk, bqk, wv, bv = (np.asarray(p, np.float32) for p in params)
    d = wqk.shape[0]
    hd = num_blocks * d
    wqk_bd = np.kron(np.eye(num_blocks, dtype=np.float32), wqk.T)          # (HD, HD)
    bqk_t = np.tile(bqk, num_blocks).reshape(1, hd)                        # (1, HD)
    wv_t = np.ascontiguousarray(wv.T)                                      # (D, D)
    bv_2 = bv.reshape(1, d)                                                # (1, D)
    r = np.arange(hd)[:, None] // d
    c = np.arange(hd)[None, :] // d
    blockones = (r == c).astype(np.float32)                                # (HD, HD)
    expand = (np.arange(d)[:, None] == (np.arange(hd)[None, :] % d)).astype(np.float32)  # (D, HD)
    return tuple(jnp.asarray(a) for a in (wqk_bd, bqk_t, wv_t, bv_2, blockones, expand))


@jax.jit
def model_forward(x1, x2, x3, input_mask, prepared):
    # x3 is unused by the reference forward; kept for signature parity.
    del x3
    wqk_bd, bqk_t, wv_t, bv_2, blockones, expand = prepared
    f32 = jnp.float32
    B, H, S, D = x1.shape
    BH = B * H
    HD = BH * D
    S_pad = ((S + 7) // 8) * 8   # 10 -> 16: whole-vreg (sublane-aligned) loads/stores

    # Fused layout plumbing: x1 and mask share one stack/transpose/pad chain and enter
    # the kernel as a single operand (heads onto the lane axis).
    xm = jnp.stack([x1.astype(f32), input_mask.astype(f32)])                  # (2,B,H,S,D)
    xm = xm.reshape(2, BH, S, D).transpose(0, 2, 1, 3).reshape(2, S, HD)      # (2,S,HD)
    xm = jnp.pad(xm, ((0, 0), (0, S_pad - S), (0, 0)))                        # (2,S_pad,HD)

    x2_2d = x2.astype(f32).reshape(HD, D)

    # Single grid-less invocation: all operands fully VMEM-resident (~170 KB total).
    # If this module is ever batched over a large leading axis, add a grid over that
    # axis with dimension_semantics=("parallel",) so v7x's 2 TensorCores both work.
    out_pad = pl.pallas_call(
        _attn_kernel,
        out_shape=jax.ShapeDtypeStruct((S_pad, HD), f32),
    )(xm, x2_2d, wqk_bd, bqk_t, wv_t, bv_2, blockones, expand)

    # (S_pad, BH*D) -> (1, B, H, S, D); the unsqueeze(0) folds into the final reshape.
    out = out_pad[:S].reshape(S, BH, D).transpose(1, 0, 2).reshape(1, B, H, S, D)
    return out


def reference_forward(x1, x2, x3, input_mask, params):
    """float64 numpy reference mirroring the PyTorch forward (for sanity checking)."""
    del x3
    wqk, bqk, wv, bv = (np.asarray(p, np.float64) for p in params)
    x1 = np.asarray(x1, np.float64)
    x2 = np.asarray(x2, np.float64)
    mask = np.asarray(input_mask, np.float64)
    qk = x1 @ wqk.T + bqk
    value = x2 @ wv.T + bv
    inv_scale = 1.0 / np.sqrt(np.sum(qk * qk, axis=-1, keepdims=True))
    s = qk * inv_scale
    e = np.exp(s - s.max(axis=-1, keepdims=True))
    soft = e / e.sum(axis=-1, keepdims=True)
    qk = soft * mask
    out = qk @ value
    return out[None]


if __name__ == "__main__":
    # Small shapes consistent with the module: B=1, H=8, S=10, D=16 (dim = 16; the spec's
    # dim=1 Linear cannot be applied to 16-wide features, and x2 is taken as (B,H,D,D) so
    # the forward is shape-consistent — same interpretation as the previous version).
    B, H, S, D = 1, 8, 10, 16
    key = jax.random.PRNGKey(0)
    k1, k2, k3, k4, kw1, kb1, kw2, kb2 = jax.random.split(key, 8)

    x1 = jax.random.normal(k1, (B, H, S, D), dtype=jnp.float32)
    x2 = jax.random.normal(k2, (B, H, D, D), dtype=jnp.float32)
    x3 = jax.random.normal(k3, (B, H, S, D), dtype=jnp.float32)   # unused by forward
    input_mask = jax.random.normal(k4, (B, H, S, D), dtype=jnp.float32)

    # Deterministic Linear params (PyTorch layout: weight (out, in), bias (out,)).
    bound = 1.0 / (D ** 0.5)
    wqk = jax.random.uniform(kw1, (D, D), jnp.float32, -bound, bound)
    bqk = jax.random.uniform(kb1, (D,), jnp.float32, -bound, bound)
    wv = jax.random.uniform(kw2, (D, D), jnp.float32, -bound, bound)
    bv = jax.random.uniform(kb2, (D,), jnp.float32, -bound, bound)
    params = (wqk, bqk, wv, bv)

    # One-time parameter prep (out of the per-call path).
    prepared = prepare_params(params, B * H)

    out = model_forward(x1, x2, x3, input_mask, prepared)
    out = jax.block_until_ready(out)

    ref = reference_forward(x1, x2, x3, input_mask, params)
    assert out.shape == (1, B, H, S, D), out.shape
    # Tolerance covers the approximate EUP reciprocal (pl.reciprocal(approx=True)) in the
    # softmax normalization; everything else is full-precision f32.
    assert np.allclose(np.asarray(out), ref, atol=2e-3, rtol=2e-3), "mismatch vs reference"

    print("KERNEL_OK")
</pallas_src>

<mosaic_0001>
module attributes {stable_mosaic.version = 11 : i64} {
  func.func @_attn_kernel(%arg0: memref<2x16x128xf32, #tpu.memory_space<vmem>>, %arg1: memref<128x16xf32, #tpu.memory_space<vmem>>, %arg2: memref<128x128xf32, #tpu.memory_space<vmem>>, %arg3: memref<1x128xf32, #tpu.memory_space<vmem>>, %arg4: memref<16x16xf32, #tpu.memory_space<vmem>>, %arg5: memref<1x16xf32, #tpu.memory_space<vmem>>, %arg6: memref<128x128xf32, #tpu.memory_space<vmem>>, %arg7: memref<16x128xf32, #tpu.memory_space<vmem>>, %arg8: memref<16x128xf32, #tpu.memory_space<vmem>>) attributes {dimension_semantics = [], scalar_prefetch = 0 : i64, scratch_operands = 0 : i64, tpu.core_type = #tpu.core_type<tc>} {
    %c0 = arith.constant 0 : index
    %c0_0 = arith.constant 0 : index
    %c0_1 = arith.constant 0 : index
    %0 = vector.load %arg0[%c0, %c0_0, %c0_1] : memref<2x16x128xf32, #tpu.memory_space<vmem>>, vector<1x16x128xf32>
    %1 = vector.shape_cast %0 : vector<1x16x128xf32> to vector<16x128xf32>
    %c1 = arith.constant 1 : index
    %c0_2 = arith.constant 0 : index
    %c0_3 = arith.constant 0 : index
    %2 = vector.load %arg0[%c1, %c0_2, %c0_3] : memref<2x16x128xf32, #tpu.memory_space<vmem>>, vector<1x16x128xf32>
    %3 = vector.shape_cast %2 : vector<1x16x128xf32> to vector<16x128xf32>
    %c0_4 = arith.constant 0 : index
    %c0_5 = arith.constant 0 : index
    %4 = vector.load %arg1[%c0_4, %c0_5] : memref<128x16xf32, #tpu.memory_space<vmem>>, vector<128x16xf32>
    %c0_6 = arith.constant 0 : index
    %c0_7 = arith.constant 0 : index
    %5 = vector.load %arg2[%c0_6, %c0_7] : memref<128x128xf32, #tpu.memory_space<vmem>>, vector<128x128xf32>
    %c0_8 = arith.constant 0 : index
    %c0_9 = arith.constant 0 : index
    %6 = vector.load %arg3[%c0_8, %c0_9] : memref<1x128xf32, #tpu.memory_space<vmem>>, vector<1x128xf32>
    %c0_10 = arith.constant 0 : index
    %c0_11 = arith.constant 0 : index
    %7 = vector.load %arg4[%c0_10, %c0_11] : memref<16x16xf32, #tpu.memory_space<vmem>>, vector<16x16xf32>
    %c0_12 = arith.constant 0 : index
    %c0_13 = arith.constant 0 : index
    %8 = vector.load %arg5[%c0_12, %c0_13] : memref<1x16xf32, #tpu.memory_space<vmem>>, vector<1x16xf32>
    %c0_14 = arith.constant 0 : index
    %c0_15 = arith.constant 0 : index
    %9 = vector.load %arg6[%c0_14, %c0_15] : memref<128x128xf32, #tpu.memory_space<vmem>>, vector<128x128xf32>
    %c0_16 = arith.constant 0 : index
    %c0_17 = arith.constant 0 : index
    %10 = vector.load %arg7[%c0_16, %c0_17] : memref<16x128xf32, #tpu.memory_space<vmem>>, vector<16x128xf32>
    %cst = arith.constant dense<0.000000e+00> : vector<16x128xf32>
    %11 = tpu.matmul %1, %5, %cst {dimension_numbers = #tpu.dot_dimension_numbers<[1], [0], [0], [1], [0, 0, 1, 1], [], []>} : vector<16x128xf32>, vector<128x128xf32>, vector<16x128xf32> -> vector<16x128xf32>
    %12 = vector.broadcast %6 : vector<1x128xf32> to vector<16x128xf32>
    %13 = arith.addf %11, %12 : vector<16x128xf32>
    %cst_18 = arith.constant dense<0.000000e+00> : vector<128x16xf32>
    %14 = tpu.matmul %4, %7, %cst_18 {dimension_numbers = #tpu.dot_dimension_numbers<[1], [0], [0], [1], [0, 0, 1, 1], [], []>} : vector<128x16xf32>, vector<16x16xf32>, vector<128x16xf32> -> vector<128x16xf32>
    %15 = vector.broadcast %8 : vector<1x16xf32> to vector<128x16xf32>
    %16 = arith.addf %14, %15 : vector<128x16xf32>
    %17 = arith.mulf %13, %13 : vector<16x128xf32>
    %cst_19 = arith.constant dense<0.000000e+00> : vector<16x128xf32>
    %18 = tpu.matmul %17, %9, %cst_19 {dimension_numbers = #tpu.dot_dimension_numbers<[1], [0], [0], [1], [0, 0, 1, 1], [], []>} : vector<16x128xf32>, vector<128x128xf32>, vector<16x128xf32> -> vector<16x128xf32>
    %19 = math.rsqrt %18 : vector<16x128xf32>
    %20 = arith.mulf %13, %19 : vector<16x128xf32>
    %21 = math.exp %20 : vector<16x128xf32>
    %cst_20 = arith.constant dense<0.000000e+00> : vector<16x128xf32>
    %22 = tpu.matmul %21, %9, %cst_20 {dimension_numbers = #tpu.dot_dimension_numbers<[1], [0], [0], [1], [0, 0, 1, 1], [], []>} : vector<16x128xf32>, vector<128x128xf32>, vector<16x128xf32> -> vector<16x128xf32>
    %cst_21 = arith.constant dense<0.000000e+00> : vector<128x128xf32>
    %23 = tpu.matmul %16, %10, %cst_21 {dimension_numbers = #tpu.dot_dimension_numbers<[1], [0], [0], [1], [0, 0, 1, 1], [], []>} : vector<128x16xf32>, vector<16x128xf32>, vector<128x128xf32> -> vector<128x128xf32>
    %24 = arith.mulf %23, %9 : vector<128x128xf32>
    %25 = arith.mulf %21, %3 : vector<16x128xf32>
    %cst_22 = arith.constant dense<0.000000e+00> : vector<16x128xf32>
    %26 = tpu.matmul %25, %24, %cst_22 {dimension_numbers = #tpu.dot_dimension_numbers<[1], [0], [0], [1], [0, 0, 1, 1], [], []>} : vector<16x128xf32>, vector<128x128xf32>, vector<16x128xf32> -> vector<16x128xf32>
    %27 = tpu.reciprocal %22 {approx = true} : vector<16x128xf32> -> vector<16x128xf32>
    %28 = arith.mulf %26, %27 : vector<16x128xf32>
    %c0_23 = arith.constant 0 : index
    %c0_24 = arith.constant 0 : index
    %29 = vector.load %arg8[%c0_23, %c0_24] : memref<16x128xf32, #tpu.memory_space<vmem>>, vector<16x128xf32>
    tpu.vector_store %arg8[%c0_23, %c0_24], %28 {strides = array<i32>} : memref<16x128xf32, #tpu.memory_space<vmem>>, vector<16x128xf32>,
    return
  }
}

</mosaic_0001>

<llo_original>
// kernel: model_forward.1
$region0: #{model_forward.1}
  #allocation0 [shape = 'u32[]', space=smem, size = 0x4, offset = 0x4, fixed_abs, tag = 'smem constant byte address 0x4 - core index']
  #allocation1 [shape = 'u32[72,128]{1,0:T(1,128)}', space=vmem, size = 0x9000, scoped, tag = 'internal scratch']
  %s0 = inlined_call_operand.vmem [shape: f32[2,16,128], index: 0, kind: input, shape index: {}]
  %s1 = inlined_call_operand.vmem [shape: f32[128,16], index: 1, kind: input, shape index: {}]
  %s2 = inlined_call_operand.vmem [shape: f32[128,128], index: 2, kind: input, shape index: {}]
  %s3 = inlined_call_operand.vmem [shape: f32[1,128], index: 3, kind: input, shape index: {}]
  %s4 = inlined_call_operand.vmem [shape: f32[16,16], index: 4, kind: input, shape index: {}]
  %s5 = inlined_call_operand.vmem [shape: f32[1,16], index: 5, kind: input, shape index: {}]
  %s6 = inlined_call_operand.vmem [shape: f32[128,128], index: 6, kind: input, shape index: {}]
  %s7 = inlined_call_operand.vmem [shape: f32[16,128], index: 7, kind: input, shape index: {}]
  %s8 = inlined_call_operand.vmem [shape: f32[16,128], index: 8, kind: output, shape index: {}]
  %s9 = sld [smem:[#allocation0]]
  $region42: #{model_forward.1} parent=0
    _
  %s11 = ssub.s32 1, %s9
  %s12 = scalar_select 0, %s11, %s9
  // Predicated region
  $region2: #{model_forward.1} parent=0 // pred_check
    _
  $region3: #{model_forward.1} parent=0 // pred_check_branch
    %14 = sbr.rel (0) target = $region5
  $region4: #{model_forward.1} parent=0 // pred_region
    _
  $region5: #{model_forward.1} parent=0 // pred_fallthru
    _
  // Predicated region
  $region6: #{model_forward.1} parent=0 // pred_check
    _
  $region7: #{model_forward.1} parent=0 // pred_check_branch
    %16 = sbr.rel (0) target = $region9
  $region8: #{model_forward.1} parent=0 // pred_region
    _
  $region9: #{model_forward.1} parent=0 // pred_fallthru
    _
  // Predicated region
  $region10: #{model_forward.1} parent=0 // pred_check
    _
  $region11: #{model_forward.1} parent=0 // pred_check_branch
    %18 = sbr.rel (0) target = $region13
  $region12: #{model_forward.1} parent=0 // pred_region
    _
  $region13: #{model_forward.1} parent=0 // pred_fallthru
    _
  // Predicated region
  $region14: #{model_forward.1} parent=0 // pred_check
    _
  $region15: #{model_forward.1} parent=0 // pred_check_branch
    %20 = sbr.rel (0) target = $region17
  $region16: #{model_forward.1} parent=0 // pred_region
    _
  $region17: #{model_forward.1} parent=0 // pred_fallthru
    _
  // Predicated region
  $region18: #{model_forward.1} parent=0 // pred_check
    _
  $region19: #{model_forward.1} parent=0 // pred_check_branch
    %22 = sbr.rel (0) target = $region21
  $region20: #{model_forward.1} parent=0 // pred_region
    _
  $region21: #{model_forward.1} parent=0 // pred_fallthru
    _
  // Predicated region
  $region22: #{model_forward.1} parent=0 // pred_check
    _
  $region23: #{model_forward.1} parent=0 // pred_check_branch
    %24 = sbr.rel (0) target = $region25
  $region24: #{model_forward.1} parent=0 // pred_region
    _
  $region25: #{model_forward.1} parent=0 // pred_fallthru
    _
  // Predicated region
  $region26: #{model_forward.1} parent=0 // pred_check
    _
  $region27: #{model_forward.1} parent=0 // pred_check_branch
    %26 = sbr.rel (0) target = $region29
  $region28: #{model_forward.1} parent=0 // pred_region
    _
  $region29: #{model_forward.1} parent=0 // pred_fallthru
    _
  // Predicated region
  $region30: #{model_forward.1} parent=0 // pred_check
    _
  $region31: #{model_forward.1} parent=0 // pred_check_branch
    %28 = sbr.rel (0) target = $region33
  $region32: #{model_forward.1} parent=0 // pred_region
    _
  $region33: #{model_forward.1} parent=0 // pred_fallthru
    _
  %v29 = vld [vmem:[%s0] sm:$0xff]
  %v30 = vld [vmem:[%s0 + $0x8] sm:$0xff]
  %s31 = scalar_lea.vmem %s0, 16
  %v32 = vld [vmem:[%s31] sm:$0xff]
  %v33 = vld [vmem:[%s31 + $0x8] sm:$0xff]
  %v34 = vld [vmem:[%s1] sm:$0xff]
  %v35 = vld [vmem:[%s1 + $0x8] sm:$0xff]
  %v36 = vld [vmem:[%s1 + $0x10] sm:$0xff]
  %v37 = vld [vmem:[%s1 + $0x18] sm:$0xff]
  %v38 = vld [vmem:[%s1 + $0x20] sm:$0xff]
  %v39 = vld [vmem:[%s1 + $0x28] sm:$0xff]
  %v40 = vld [vmem:[%s1 + $0x30] sm:$0xff]
  %v41 = vld [vmem:[%s1 + $0x38] sm:$0xff]
  %v42 = vld [vmem:[%s1 + $0x40] sm:$0xff]
  %v43 = vld [vmem:[%s1 + $0x48] sm:$0xff]
  %v44 = vld [vmem:[%s1 + $0x50] sm:$0xff]
  %v45 = vld [vmem:[%s1 + $0x58] sm:$0xff]
  %v46 = vld [vmem:[%s1 + $0x60] sm:$0xff]
  %v47 = vld [vmem:[%s1 + $0x68] sm:$0xff]
  %v48 = vld [vmem:[%s1 + $0x70] sm:$0xff]
  %v49 = vld [vmem:[%s1 + $0x78] sm:$0xff]
  %v50 = vld [vmem:[%s2] sm:$0xff]
  %v51 = vld [vmem:[%s2 + $0x8] sm:$0xff]
  %v52 = vld [vmem:[%s2 + $0x10] sm:$0xff]
  %v53 = vld [vmem:[%s2 + $0x18] sm:$0xff]
  %v54 = vld [vmem:[%s2 + $0x20] sm:$0xff]
  %v55 = vld [vmem:[%s2 + $0x28] sm:$0xff]
  %v56 = vld [vmem:[%s2 + $0x30] sm:$0xff]
  %v57 = vld [vmem:[%s2 + $0x38] sm:$0xff]
  %v58 = vld [vmem:[%s2 + $0x40] sm:$0xff]
  %v59 = vld [vmem:[%s2 + $0x48] sm:$0xff]
  %v60 = vld [vmem:[%s2 + $0x50] sm:$0xff]
  %v61 = vld [vmem:[%s2 + $0x58] sm:$0xff]
  %v62 = vld [vmem:[%s2 + $0x60] sm:$0xff]
  %v63 = vld [vmem:[%s2 + $0x68] sm:$0xff]
  %v64 = vld [vmem:[%s2 + $0x70] sm:$0xff]
  %v65 = vld [vmem:[%s2 + $0x78] sm:$0xff]
  %v66 = vld [vmem:[%s3] sm:$0x1]
  %v67 = vld [vmem:[%s4] sm:$0xff]
  %v68 = vld [vmem:[%s4 + $0x8] sm:$0xff]
  %v69 = vld [vmem:[%s5] sm:$0x1]
  %v70 = vld [vmem:[%s6] sm:$0xff]
  %v71 = vld [vmem:[%s6 + $0x8] sm:$0xff]
  %v72 = vld [vmem:[%s6 + $0x10] sm:$0xff]
  %v73 = vld [vmem:[%s6 + $0x18] sm:$0xff]
  %v74 = vld [vmem:[%s6 + $0x20] sm:$0xff]
  %v75 = vld [vmem:[%s6 + $0x28] sm:$0xff]
  %v76 = vld [vmem:[%s6 + $0x30] sm:$0xff]
  %v77 = vld [vmem:[%s6 + $0x38] sm:$0xff]
  %v78 = vld [vmem:[%s6 + $0x40] sm:$0xff]
  %v79 = vld [vmem:[%s6 + $0x48] sm:$0xff]
  %v80 = vld [vmem:[%s6 + $0x50] sm:$0xff]
  %v81 = vld [vmem:[%s6 + $0x58] sm:$0xff]
  %v82 = vld [vmem:[%s6 + $0x60] sm:$0xff]
  %v83 = vld [vmem:[%s6 + $0x68] sm:$0xff]
  %v84 = vld [vmem:[%s6 + $0x70] sm:$0xff]
  %v85 = vld [vmem:[%s6 + $0x78] sm:$0xff]
  %v86 = vld [vmem:[%s7] sm:$0xff]
  %v87 = vld [vmem:[%s7 + $0x8] sm:$0xff]
  %v89 = vperm.slane %v66, 0
  %91 = vmatpush.msra.mxu0 %v65
  %92 = vmatpush.msra.mxu0 %v64
  %93 = vmatpush.msra.mxu0 %v63
  %94 = vmatpush.msra.mxu0 %v62
  %95 = vmatpush.msra.mxu0 %v61
  %96 = vmatpush.msra.mxu0 %v60
  %97 = vmatpush.msra.mxu0 %v59
  %98 = vmatpush.msra.mxu0 %v58
  %99 = vmatpush.msra.mxu0 %v57
  %100 = vmatpush.msra.mxu0 %v56
  %101 = vmatpush.msra.mxu0 %v55
  %102 = vmatpush.msra.mxu0 %v54
  %103 = vmatpush.msra.mxu0 %v53
  %104 = vmatpush.msra.mxu0 %v52
  %105 = vmatpush.msra.mxu0 %v51
  %106 = vmatpush.msra.mxu0 %v50
  %107 = vmatmul.f32.gmra.mxu0 %v29
  %v108 = vpop.f32.mrf.mxu0
  %v109 = vadd.f32 %v89, %v108
  %110 = vmatmul.f32.gmra.mxu0 %v30
  %v111 = vpop.f32.mrf.mxu0
  %v112 = vadd.f32 %v89, %v111
  %113 = vdwg.mxu0
  %v115 = vperm.slane %v69, 0
  %vm117 = vcmask 130048
  %v119 = vsel %vm117, %v34, 0
  %v122 = vsel %vm117, %v35, 0
  %v125 = vsel %vm117, %v36, 0
  %v128 = vsel %vm117, %v37, 0
  %v131 = vsel %vm117, %v38, 0
  %v134 = vsel %vm117, %v39, 0
  %v137 = vsel %vm117, %v40, 0
  %v140 = vsel %vm117, %v41, 0
  %v143 = vsel %vm117, %v42, 0
  %v146 = vsel %vm117, %v43, 0
  %v149 = vsel %vm117, %v44, 0
  %v152 = vsel %vm117, %v45, 0
  %v155 = vsel %vm117, %v46, 0
  %v158 = vsel %vm117, %v47, 0
  %v161 = vsel %vm117, %v48, 0
  %v164 = vsel %vm117, %v49, 0
  %166 = vmatpush.msra.mxu0 0.0
  %167 = vmatpush.msra.mxu0 0.0
  %168 = vmatpush.msra.mxu0 0.0
  %169 = vmatpush.msra.mxu0 0.0
  %170 = vmatpush.msra.mxu0 0.0
  %171 = vmatpush.msra.mxu0 0.0
  %172 = vmatpush.msra.mxu0 0.0
  %173 = vmatpush.msra.mxu0 0.0
  %174 = vmatpush.msra.mxu0 0.0
  %175 = vmatpush.msra.mxu0 0.0
  %176 = vmatpush.msra.mxu0 0.0
  %177 = vmatpush.msra.mxu0 0.0
  %178 = vmatpush.msra.mxu0 0.0
  %179 = vmatpush.msra.mxu0 0.0
  %180 = vmatpush.msra.mxu0 %v68
  %181 = vmatpush.msra.mxu0 %v67
  %182 = vmatmul.f32.gmra.mxu0 %v119
  %v183 = vpop.f32.mrf.mxu0
  %v184 = vadd.f32 %v115, %v183
  %185 = vmatmul.f32.gmra.mxu0 %v122
  %v186 = vpop.f32.mrf.mxu0
  %v187 = vadd.f32 %v115, %v186
  %188 = vmatmul.f32.gmra.mxu0 %v125
  %v189 = vpop.f32.mrf.mxu0
  %v190 = vadd.f32 %v115, %v189
  %191 = vmatmul.f32.gmra.mxu0 %v128
  %v192 = vpop.f32.mrf.mxu0
  %v193 = vadd.f32 %v115, %v192
  %194 = vmatmul.f32.gmra.mxu0 %v131
  %v195 = vpop.f32.mrf.mxu0
  %v196 = vadd.f32 %v115, %v195
  %197 = vmatmul.f32.gmra.mxu0 %v134
  %v198 = vpop.f32.mrf.mxu0
  %v199 = vadd.f32 %v115, %v198
  %200 = vmatmul.f32.gmra.mxu0 %v137
  %v201 = vpop.f32.mrf.mxu0
  %v202 = vadd.f32 %v115, %v201
  %203 = vmatmul.f32.gmra.mxu0 %v140
  %v204 = vpop.f32.mrf.mxu0
  %v205 = vadd.f32 %v115, %v204
  %206 = vmatmul.f32.gmra.mxu0 %v143
  %v207 = vpop.f32.mrf.mxu0
  %v208 = vadd.f32 %v115, %v207
  %209 = vmatmul.f32.gmra.mxu0 %v146
  %v210 = vpop.f32.mrf.mxu0
  %v211 = vadd.f32 %v115, %v210
  %212 = vmatmul.f32.gmra.mxu0 %v149
  %v213 = vpop.f32.mrf.mxu0
  %v214 = vadd.f32 %v115, %v213
  %215 = vmatmul.f32.gmra.mxu0 %v152
  %v216 = vpop.f32.mrf.mxu0
  %v217 = vadd.f32 %v115, %v216
  %218 = vmatmul.f32.gmra.mxu0 %v155
  %v219 = vpop.f32.mrf.mxu0
  %v220 = vadd.f32 %v115, %v219
  %221 = vmatmul.f32.gmra.mxu0 %v158
  %v222 = vpop.f32.mrf.mxu0
  %v223 = vadd.f32 %v115, %v222
  %224 = vmatmul.f32.gmra.mxu0 %v161
  %v225 = vpop.f32.mrf.mxu0
  %v226 = vadd.f32 %v115, %v225
  %227 = vmatmul.f32.gmra.mxu0 %v164
  %v228 = vpop.f32.mrf.mxu0
  %v229 = vadd.f32 %v115, %v228
  %230 = vdwg.mxu0
  %v231 = vmul.f32 %v109, %v109
  %v232 = vmul.f32 %v112, %v112
  %233 = vmatpush.msra.mxu0 %v85
  %234 = vmatpush.msra.mxu0 %v84
  %235 = vmatpush.msra.mxu0 %v83
  %236 = vmatpush.msra.mxu0 %v82
  %237 = vmatpush.msra.mxu0 %v81
  %238 = vmatpush.msra.mxu0 %v80
  %239 = vmatpush.msra.mxu0 %v79
  %240 = vmatpush.msra.mxu0 %v78
  %241 = vmatpush.msra.mxu0 %v77
  %242 = vmatpush.msra.mxu0 %v76
  %243 = vmatpush.msra.mxu0 %v75
  %244 = vmatpush.msra.mxu0 %v74
  %245 = vmatpush.msra.mxu0 %v73
  %246 = vmatpush.msra.mxu0 %v72
  %247 = vmatpush.msra.mxu0 %v71
  %248 = vmatpush.msra.mxu0 %v70
  %249 = vmatmul.f32.gmra.mxu0 %v231
  %v250 = vpop.f32.mrf.mxu0
  %v251 = vadd.f32 0.0, %v250
  %252 = vmatmul.f32.gmra.mxu0 %v232
  %v253 = vpop.f32.mrf.mxu0
  %v254 = vadd.f32 0.0, %v253
  %255 = vdwg.mxu0
  %v256 = vrsqrt.pop %v251
  %v257 = vmul.f32 %v256, %v251
  %v258 = vmul.f32 %v257, %v256
  %v259 = vmul.f32 0.5, %v258
  %v260 = vsub.f32 1.5, %v259
  %v261 = vmul.f32 %v256, %v260
  %vm262 = vweird.f32 %v251
  %vm263 = vweird.f32 %v256
  %vm264 = vmor %vm262, %vm263
  %v265 = vsel %vm264, %v256, %v261
  %v266 = vrsqrt.pop %v254
  %v267 = vmul.f32 %v266, %v254
  %v268 = vmul.f32 %v267, %v266
  %v269 = vmul.f32 0.5, %v268
  %v270 = vsub.f32 1.5, %v269
  %v271 = vmul.f32 %v266, %v270
  %vm272 = vweird.f32 %v254
  %vm273 = vweird.f32 %v266
  %vm274 = vmor %vm272, %vm273
  %v275 = vsel %vm274, %v266, %v271
  %v276 = vmul.f32 %v109, %v265
  %v277 = vmul.f32 %v112, %v275
  %v278 = vmul.f32 %v276, 1.442695
  %v279 = vpow.pop %v278
  %v280 = vmul.f32 %v277, 1.442695
  %v281 = vpow.pop %v280
  %282 = vmatpush.msra.mxu0 %v85
  %283 = vmatpush.msra.mxu0 %v84
  %284 = vmatpush.msra.mxu0 %v83
  %285 = vmatpush.msra.mxu0 %v82
  %286 = vmatpush.msra.mxu0 %v81
  %287 = vmatpush.msra.mxu0 %v80
  %288 = vmatpush.msra.mxu0 %v79
  %289 = vmatpush.msra.mxu0 %v78
  %290 = vmatpush.msra.mxu0 %v77
  %291 = vmatpush.msra.mxu0 %v76
  %292 = vmatpush.msra.mxu0 %v75
  %293 = vmatpush.msra.mxu0 %v74
  %294 = vmatpush.msra.mxu0 %v73
  %295 = vmatpush.msra.mxu0 %v72
  %296 = vmatpush.msra.mxu0 %v71
  %297 = vmatpush.msra.mxu0 %v70
  %298 = vmatmul.f32.gmra.mxu0 %v279
  %v299 = vpop.f32.mrf.mxu0
  %v300 = vadd.f32 0.0, %v299
  %301 = vmatmul.f32.gmra.mxu0 %v281
  %v302 = vpop.f32.mrf.mxu0
  %v303 = vadd.f32 0.0, %v302
  %304 = vdwg.mxu0
  %v306 = vsel %vm117, %v184, 0
  %v309 = vsel %vm117, %v187, 0
  %v312 = vsel %vm117, %v190, 0
  %v315 = vsel %vm117, %v193, 0
  %v318 = vsel %vm117, %v196, 0
  %v321 = vsel %vm117, %v199, 0
  %v324 = vsel %vm117, %v202, 0
  %v327 = vsel %vm117, %v205, 0
  %v330 = vsel %vm117, %v208, 0
  %v333 = vsel %vm117, %v211, 0
  %v336 = vsel %vm117, %v214, 0
  %v339 = vsel %vm117, %v217, 0
  %v342 = vsel %vm117, %v220, 0
  %v345 = vsel %vm117, %v223, 0
  %v348 = vsel %vm117, %v226, 0
  %v351 = vsel %vm117, %v229, 0
  %353 = vmatpush.msra.mxu0 0.0
  %354 = vmatpush.msra.mxu0 0.0
  %355 = vmatpush.msra.mxu0 0.0
  %356 = vmatpush.msra.mxu0 0.0
  %357 = vmatpush.msra.mxu0 0.0
  %358 = vmatpush.msra.mxu0 0.0
  %359 = vmatpush.msra.mxu0 0.0
  %360 = vmatpush.msra.mxu0 0.0
  %361 = vmatpush.msra.mxu0 0.0
  %362 = vmatpush.msra.mxu0 0.0
  %363 = vmatpush.msra.mxu0 0.0
  %364 = vmatpush.msra.mxu0 0.0
  %365 = vmatpush.msra.mxu0 0.0
  %366 = vmatpush.msra.mxu0 0.0
  %367 = vmatpush.msra.mxu0 %v87
  %368 = vmatpush.msra.mxu0 %v86
  %369 = vmatmul.f32.gmra.mxu0 %v306
  %v370 = vpop.f32.mrf.mxu0
  %v371 = vadd.f32 0.0, %v370
  %372 = vmatmul.f32.gmra.mxu0 %v309
  %v373 = vpop.f32.mrf.mxu0
  %v374 = vadd.f32 0.0, %v373
  %375 = vmatmul.f32.gmra.mxu0 %v312
  %v376 = vpop.f32.mrf.mxu0
  %v377 = vadd.f32 0.0, %v376
  %378 = vmatmul.f32.gmra.mxu0 %v315
  %v379 = vpop.f32.mrf.mxu0
  %v380 = vadd.f32 0.0, %v379
  %381 = vmatmul.f32.gmra.mxu0 %v318
  %v382 = vpop.f32.mrf.mxu0
  %v383 = vadd.f32 0.0, %v382
  %384 = vmatmul.f32.gmra.mxu0 %v321
  %v385 = vpop.f32.mrf.mxu0
  %v386 = vadd.f32 0.0, %v385
  %387 = vmatmul.f32.gmra.mxu0 %v324
  %v388 = vpop.f32.mrf.mxu0
  %v389 = vadd.f32 0.0, %v388
  %390 = vmatmul.f32.gmra.mxu0 %v327
  %v391 = vpop.f32.mrf.mxu0
  %v392 = vadd.f32 0.0, %v391
  %393 = vmatmul.f32.gmra.mxu0 %v330
  %v394 = vpop.f32.mrf.mxu0
  %v395 = vadd.f32 0.0, %v394
  %396 = vmatmul.f32.gmra.mxu0 %v333
  %v397 = vpop.f32.mrf.mxu0
  %v398 = vadd.f32 0.0, %v397
  %399 = vmatmul.f32.gmra.mxu0 %v336
  %v400 = vpop.f32.mrf.mxu0
  %v401 = vadd.f32 0.0, %v400
  %402 = vmatmul.f32.gmra.mxu0 %v339
  %v403 = vpop.f32.mrf.mxu0
  %v404 = vadd.f32 0.0, %v403
  %405 = vmatmul.f32.gmra.mxu0 %v342
  %v406 = vpop.f32.mrf.mxu0
  %v407 = vadd.f32 0.0, %v406
  %408 = vmatmul.f32.gmra.mxu0 %v345
  %v409 = vpop.f32.mrf.mxu0
  %v410 = vadd.f32 0.0, %v409
  %411 = vmatmul.f32.gmra.mxu0 %v348
  %v412 = vpop.f32.mrf.mxu0
  %v413 = vadd.f32 0.0, %v412
  %414 = vmatmul.f32.gmra.mxu0 %v351
  %v415 = vpop.f32.mrf.mxu0
  %v416 = vadd.f32 0.0, %v415
  %417 = vdwg.mxu0
  %v418 = vmul.f32 %v371, %v70
  %v419 = vmul.f32 %v374, %v71
  %v420 = vmul.f32 %v377, %v72
  %v421 = vmul.f32 %v380, %v73
  %v422 = vmul.f32 %v383, %v74
  %v423 = vmul.f32 %v386, %v75
  %v424 = vmul.f32 %v389, %v76
  %v425 = vmul.f32 %v392, %v77
  %v426 = vmul.f32 %v395, %v78
  %v427 = vmul.f32 %v398, %v79
  %v428 = vmul.f32 %v401, %v80
  %v429 = vmul.f32 %v404, %v81
  %v430 = vmul.f32 %v407, %v82
  %v431 = vmul.f32 %v410, %v83
  %v432 = vmul.f32 %v413, %v84
  %v433 = vmul.f32 %v416, %v85
  %v434 = vmul.f32 %v279, %v32
  %v435 = vmul.f32 %v281, %v33
  %436 = vmatpush.msra.mxu0 %v433
  %437 = vmatpush.msra.mxu0 %v432
  %438 = vmatpush.msra.mxu0 %v431
  %439 = vmatpush.msra.mxu0 %v430
  %440 = vmatpush.msra.mxu0 %v429
  %441 = vmatpush.msra.mxu0 %v428
  %442 = vmatpush.msra.mxu0 %v427
  %443 = vmatpush.msra.mxu0 %v426
  %444 = vmatpush.msra.mxu0 %v425
  %445 = vmatpush.msra.mxu0 %v424
  %446 = vmatpush.msra.mxu0 %v423
  %447 = vmatpush.msra.mxu0 %v422
  %448 = vmatpush.msra.mxu0 %v421
  %449 = vmatpush.msra.mxu0 %v420
  %450 = vmatpush.msra.mxu0 %v419
  %451 = vmatpush.msra.mxu0 %v418
  %452 = vmatmul.f32.gmra.mxu0 %v434
  %v453 = vpop.f32.mrf.mxu0
  %v454 = vadd.f32 0.0, %v453
  %455 = vmatmul.f32.gmra.mxu0 %v435
  %v456 = vpop.f32.mrf.mxu0
  %v457 = vadd.f32 0.0, %v456
  %458 = vdwg.mxu0
  %v459 = vrcp.pop %v300
  %v460 = vrcp.pop %v303
  %v461 = vmul.f32 %v454, %v459
  %v462 = vmul.f32 %v457, %v460
  %463 = vst [vmem:[%s8] sm:$0xff] %v461
  %464 = vst [vmem:[%s8 + $0x8] sm:$0xff] %v462
  // Predicated region
  $region34: #{model_forward.1} parent=0 // pred_check
    _
  $region35: #{model_forward.1} parent=0 // pred_check_branch
    %466 = sbr.rel (0) target = $region37
  $region36: #{model_forward.1} parent=0 // pred_region
    _
  $region37: #{model_forward.1} parent=0 // pred_fallthru
    _
  // Predicated region
  $region38: #{model_forward.1} parent=0 // pred_check
    _
  $region39: #{model_forward.1} parent=0 // pred_check_branch
    %468 = sbr.rel (0) target = $region41
  $region40: #{model_forward.1} parent=0 // pred_region
    _
  $region41: #{model_forward.1} parent=0 // pred_fallthru
    _

</llo_original>
